<compile_context>
chip_gen: v7x
topology: tpu7x:2x2x1
jax: 0.10.0
libtpu: 0.0.40
codegen_flags: <defaults>
</compile_context>

<pallas_src>
import functools

import jax
import jax.numpy as jnp
import numpy as np
from jax.experimental import pallas as pl
from jax.experimental.pallas import tpu as pltpu


# ---------------------------------------------------------------------------
# Fused Pallas kernel
# ---------------------------------------------------------------------------
def _tgcn_cell_kernel(n_half,
                      x_ref, h_ref, a1_ref, a2_ref,
                      w1xr_ref, w1xu_ref, w2x_ref,
                      w1hr_ref, w1hu_ref, w2h_ref,
                      b1r_ref, b1u_ref, b2_ref,
                      out_ref):
    """Fused T-GCN GRU cell; every operand is a single resident VMEM block.

    Rows of x / h / a1-columns / a2 / out are in working (parity-major) order; rows of
    a1 (hence conv1's output) are in node-half-major ("split") order, which turns the
    PyTorch chunk/reshape interleave of `ru` into four contiguous static half slices —
    no gathers, no per-batch loop, no non-128-aligned column slices.
    """
    f32 = jnp.float32
    bf16 = jnp.bfloat16

    x = x_ref[...]                        # bf16 (N, c_in)   -- MXU only
    h = h_ref[...]                        # f32  (N, nhid)   -- carried GRU state
    h_mx = h.astype(bf16)                 # bf16 copy only for the MXU

    # conv1, r / u column halves computed as separate lane-aligned results.
    m1r = (jnp.dot(x, w1xr_ref[...], preferred_element_type=f32)
           + jnp.dot(h_mx, w1hr_ref[...], preferred_element_type=f32))
    m1u = (jnp.dot(x, w1xu_ref[...], preferred_element_type=f32)
           + jnp.dot(h_mx, w1hu_ref[...], preferred_element_type=f32))
    a1 = a1_ref[...]                      # bf16 (N, N): split rows, working cols
    ru0 = jax.nn.sigmoid(
        jnp.dot(a1, m1r.astype(bf16), preferred_element_type=f32) + b1r_ref[...])
    ru1 = jax.nn.sigmoid(
        jnp.dot(a1, m1u.astype(bf16), preferred_element_type=f32) + b1u_ref[...])

    # torch.chunk + reshape interleave == contiguous half-row stacks in these orders.
    r = jnp.concatenate([ru0[:n_half], ru1[:n_half]], axis=0)   # working order
    u = jnp.concatenate([ru0[n_half:], ru1[n_half:]], axis=0)   # working order

    # conv2: c = tanh(A_hat @ ([x | r*h] @ W2) + b2), working row order.
    m2 = (jnp.dot(x, w2x_ref[...], preferred_element_type=f32)
          + jnp.dot((r * h).astype(bf16), w2h_ref[...], preferred_element_type=f32))
    c = jnp.tanh(
        jnp.dot(a2_ref[...], m2.astype(bf16), preferred_element_type=f32) + b2_ref[...])

    # GRU blend fused with the final store; the output aliases the h input buffer in HBM.
    out_ref[...] = u * h + (1.0 - u) * c


# ---------------------------------------------------------------------------
# Graph / parameter preparation (done once per graph / per parameter set)
# ---------------------------------------------------------------------------
def dense_gcn_adj(edge_index, num_nodes):
    """A_hat = D^-1/2 (A + I) D^-1/2 (PyG gcn_norm for a symmetric, duplicate-free
    edge_index; duplicate edges / pre-existing self-loops would need deduping first)."""
    src, dst = edge_index[0], edge_index[1]
    a = jnp.zeros((num_nodes, num_nodes), jnp.float32).at[dst, src].add(1.0)
    a = a + jnp.eye(num_nodes, dtype=jnp.float32)
    deg = a.sum(axis=1)
    dinv = jnp.where(deg > 0.0, 1.0 / jnp.sqrt(deg), 0.0)
    return dinv[:, None] * a * dinv[None, :]


def working_permutations(batch, num_nodes):
    """Row orders used by the fused kernel (perm[pos] = natural row index).

    working (w): s = parity*N/2   + b*half + k  <->  natural b*num_nodes + 2k + parity
    split   (s): t = nodehalf*N/2 + b*half + k  <->  natural b*num_nodes + nodehalf*half + k
    """
    half = num_nodes // 2
    n = batch * num_nodes
    b = np.repeat(np.arange(batch), half)
    k = np.tile(np.arange(half), batch)
    perm_w = np.concatenate([b * num_nodes + 2 * k,
                             b * num_nodes + 2 * k + 1]).astype(np.int32)
    perm_s = np.concatenate([b * num_nodes + k,
                             b * num_nodes + half + k]).astype(np.int32)
    inv_w = np.empty(n, np.int32)
    inv_w[perm_w] = np.arange(n, dtype=np.int32)
    return jnp.asarray(perm_w), jnp.asarray(perm_s), jnp.asarray(inv_w)


def build_graph_operands(edge_index, batch, num_nodes):
    """Graph-constant operands: bf16 A_hat in the two row orders the kernel needs."""
    n = batch * num_nodes
    adj = dense_gcn_adj(edge_index, n)
    perm_w, perm_s, inv_w = working_permutations(batch, num_nodes)
    a1 = jnp.take(jnp.take(adj, perm_s, axis=0), perm_w, axis=1)   # split rows, working cols
    a2 = jnp.take(jnp.take(adj, perm_w, axis=0), perm_w, axis=1)   # working rows & cols
    return adj, a1.astype(jnp.bfloat16), a2.astype(jnp.bfloat16), perm_w, inv_w


def prepare_params(params, c_in, nhid):
    """Split W1/W2 so no concat or non-lane-aligned slice is ever materialized; bf16 MXU weights."""
    w1, w2 = params["w1"], params["w2"]
    bf = lambda a: a.astype(jnp.bfloat16)
    return {
        "w1x_r": bf(w1[:c_in, :nhid]), "w1x_u": bf(w1[:c_in, nhid:]),
        "w1h_r": bf(w1[c_in:, :nhid]), "w1h_u": bf(w1[c_in:, nhid:]),
        "w2x": bf(w2[:c_in]), "w2h": bf(w2[c_in:]),
        "b1_r": params["b1"][:, :nhid], "b1_u": params["b1"][:, nhid:],
        "b2": params["b2"],
    }


# ---------------------------------------------------------------------------
# One recurrent step (single pallas_call); x_w/h_w are in working row order.
# ---------------------------------------------------------------------------
def tgcn_cell_step(x_w, h_w, a1, a2, kp):
    n, nhid = h_w.shape
    c_in = x_w.shape[1]
    n_half = n // 2

    flops = 2 * n * nhid * (3 * c_in + 3 * nhid + 3 * n)
    transcendentals = 3 * n * nhid
    bytes_accessed = (2 * (x_w.size + a1.size + a2.size)
                      + 2 * sum(kp[k].size for k in
                                ("w1x_r", "w1x_u", "w1h_r", "w1h_u", "w2x", "w2h"))
                      + 4 * (2 * h_w.size + kp["b1_r"].size + kp["b1_u"].size
                             + kp["b2"].size))

    vmem = functools.partial(pl.BlockSpec, memory_space=pltpu.MemorySpace.VMEM)
    return pl.pallas_call(
        functools.partial(_tgcn_cell_kernel, n_half),
        out_shape=jax.ShapeDtypeStruct((n, nhid), jnp.float32),
        in_specs=[vmem()] * 13,
        out_specs=vmem(),
        input_output_aliases={1: 0},          # new_h reuses the donated h buffer (P8)
        cost_estimate=pl.CostEstimate(flops=flops,
                                      transcendentals=transcendentals,
                                      bytes_accessed=bytes_accessed),
    )(x_w, h_w, a1, a2,
      kp["w1x_r"], kp["w1x_u"], kp["w2x"],
      kp["w1h_r"], kp["w1h_u"], kp["w2h"],
      kp["b1_r"], kp["b1_u"], kp["b2"])


# ---------------------------------------------------------------------------
# Pure-JAX f32 reference (mirrors the PyTorch module exactly)
# ---------------------------------------------------------------------------
def reference_forward(x, adj, hidden_state, params, num_nodes, nhid):
    ru_input = jnp.concatenate([x, hidden_state], axis=1)
    ru = jax.nn.sigmoid(adj @ (ru_input @ params["w1"]) + params["b1"])
    batch = x.shape[0] // num_nodes
    ru_flat = ru.reshape(batch, num_nodes * 2 * nhid)
    half = num_nodes * nhid
    r = ru_flat[:, :half].reshape(-1, nhid)
    u = ru_flat[:, half:].reshape(-1, nhid)
    c_input = jnp.concatenate([x, r * hidden_state], axis=1)
    c = jnp.tanh(adj @ (c_input @ params["w2"]) + params["b2"])
    return u * hidden_state + (1.0 - u) * c


if __name__ == "__main__":
    # Module shapes: args.c_in=4, args.c_out(nhid)=32, args.num_nodes=16, batch=2,
    # args.seq_len=4  ->  node-row dimension N = batch * num_nodes = 32.
    batch, num_nodes, c_in, nhid, seq_len = 2, 16, 4, 32, 4
    n_total = batch * num_nodes
    fin = c_in + nhid
    assert num_nodes % 2 == 0, "chunk-as-contiguous-slices trick assumes even num_nodes"

    key = jax.random.PRNGKey(0)
    k_x, k_h, k_w1, k_w2 = jax.random.split(key, 4)

    x_seq = jax.random.normal(k_x, (seq_len, n_total, c_in), dtype=jnp.float32)
    hidden0 = jax.random.normal(k_h, (n_total, nhid), dtype=jnp.float32)

    # Deterministic synthetic parameters (GCNConv1: fin -> 2*nhid, GCNConv2: fin -> nhid).
    # reset_parameters(): graph_conv1.bias = 1.0; graph_conv2.bias default = zeros.
    scale1 = (6.0 / (fin + 2 * nhid)) ** 0.5
    scale2 = (6.0 / (fin + nhid)) ** 0.5
    params = {
        "w1": jax.random.uniform(k_w1, (fin, 2 * nhid), jnp.float32, -scale1, scale1),
        "b1": jnp.ones((1, 2 * nhid), jnp.float32),
        "w2": jax.random.uniform(k_w2, (fin, nhid), jnp.float32, -scale2, scale2),
        "b2": jnp.zeros((1, nhid), jnp.float32),
    }

    # Deterministic edge_index: bidirectional ring over all N node rows.
    idx = jnp.arange(n_total, dtype=jnp.int32)
    src = jnp.concatenate([idx, (idx + 1) % n_total])
    dst = jnp.concatenate([(idx + 1) % n_total, idx])
    edge_index = jnp.stack([src, dst], axis=0)

    # Graph-constant / parameter-constant prep (once per graph, not per step).
    adj, a1, a2, perm_w, inv_w = build_graph_operands(edge_index, batch, num_nodes)
    kp = prepare_params(params, c_in, nhid)

    # Boundary layout changes happen ONCE per sequence, never per step.
    x_seq_w = jnp.take(x_seq, perm_w, axis=1).astype(jnp.bfloat16)
    h_w = jnp.take(hidden0, perm_w, axis=0)

    step = jax.jit(tgcn_cell_step, donate_argnums=(1,))
    for t in range(seq_len):
        h_w = step(x_seq_w[t], h_w, a1, a2, kp)
    h_w = jax.block_until_ready(h_w)
    new_h = jnp.take(h_w, inv_w, axis=0)          # back to natural node-row order

    # f32 reference of the PyTorch module; bf16 MXU operands => loosened tolerance.
    h_ref = hidden0
    for t in range(seq_len):
        h_ref = reference_forward(x_seq[t], adj, h_ref, params, num_nodes, nhid)

    assert new_h.shape == (n_total, nhid)
    assert jnp.allclose(new_h, h_ref, atol=5e-2, rtol=5e-2), "mismatch vs reference"

    print("KERNEL_OK")
</pallas_src>

<mosaic_0001>
module attributes {stable_mosaic.version = 11 : i64} {
  func.func @_tgcn_cell_kernel(%arg0: memref<32x4xbf16, #tpu.memory_space<vmem>>, %arg1: memref<32x32xf32, #tpu.memory_space<vmem>>, %arg2: memref<32x32xbf16, #tpu.memory_space<vmem>>, %arg3: memref<32x32xbf16, #tpu.memory_space<vmem>>, %arg4: memref<4x32xbf16, #tpu.memory_space<vmem>>, %arg5: memref<4x32xbf16, #tpu.memory_space<vmem>>, %arg6: memref<4x32xbf16, #tpu.memory_space<vmem>>, %arg7: memref<32x32xbf16, #tpu.memory_space<vmem>>, %arg8: memref<32x32xbf16, #tpu.memory_space<vmem>>, %arg9: memref<32x32xbf16, #tpu.memory_space<vmem>>, %arg10: memref<1x32xf32, #tpu.memory_space<vmem>>, %arg11: memref<1x32xf32, #tpu.memory_space<vmem>>, %arg12: memref<1x32xf32, #tpu.memory_space<vmem>>, %arg13: memref<32x32xf32, #tpu.memory_space<vmem>>) attributes {dimension_semantics = [], scalar_prefetch = 0 : i64, scratch_operands = 0 : i64, tpu.core_type = #tpu.core_type<tc>} {
    %c0 = arith.constant 0 : index
    %c0_0 = arith.constant 0 : index
    %0 = vector.load %arg0[%c0, %c0_0] : memref<32x4xbf16, #tpu.memory_space<vmem>>, vector<32x4xbf16>
    %c0_1 = arith.constant 0 : index
    %c0_2 = arith.constant 0 : index
    %1 = vector.load %arg1[%c0_1, %c0_2] : memref<32x32xf32, #tpu.memory_space<vmem>>, vector<32x32xf32>
    %2 = arith.truncf %1 : vector<32x32xf32> to vector<32x32xbf16>
    %c0_3 = arith.constant 0 : index
    %c0_4 = arith.constant 0 : index
    %3 = vector.load %arg4[%c0_3, %c0_4] : memref<4x32xbf16, #tpu.memory_space<vmem>>, vector<4x32xbf16>
    %cst = arith.constant dense<0.000000e+00> : vector<32x32xf32>
    %4 = tpu.matmul %0, %3, %cst {dimension_numbers = #tpu.dot_dimension_numbers<[1], [0], [0], [1], [0, 0, 1, 1], [], []>} : vector<32x4xbf16>, vector<4x32xbf16>, vector<32x32xf32> -> vector<32x32xf32>
    %c0_5 = arith.constant 0 : index
    %c0_6 = arith.constant 0 : index
    %5 = vector.load %arg7[%c0_5, %c0_6] : memref<32x32xbf16, #tpu.memory_space<vmem>>, vector<32x32xbf16>
    %cst_7 = arith.constant dense<0.000000e+00> : vector<32x32xf32>
    %6 = tpu.matmul %2, %5, %cst_7 {dimension_numbers = #tpu.dot_dimension_numbers<[1], [0], [0], [1], [0, 0, 1, 1], [], []>} : vector<32x32xbf16>, vector<32x32xbf16>, vector<32x32xf32> -> vector<32x32xf32>
    %7 = arith.addf %4, %6 : vector<32x32xf32>
    %c0_8 = arith.constant 0 : index
    %c0_9 = arith.constant 0 : index
    %8 = vector.load %arg5[%c0_8, %c0_9] : memref<4x32xbf16, #tpu.memory_space<vmem>>, vector<4x32xbf16>
    %cst_10 = arith.constant dense<0.000000e+00> : vector<32x32xf32>
    %9 = tpu.matmul %0, %8, %cst_10 {dimension_numbers = #tpu.dot_dimension_numbers<[1], [0], [0], [1], [0, 0, 1, 1], [], []>} : vector<32x4xbf16>, vector<4x32xbf16>, vector<32x32xf32> -> vector<32x32xf32>
    %c0_11 = arith.constant 0 : index
    %c0_12 = arith.constant 0 : index
    %10 = vector.load %arg8[%c0_11, %c0_12] : memref<32x32xbf16, #tpu.memory_space<vmem>>, vector<32x32xbf16>
    %cst_13 = arith.constant dense<0.000000e+00> : vector<32x32xf32>
    %11 = tpu.matmul %2, %10, %cst_13 {dimension_numbers = #tpu.dot_dimension_numbers<[1], [0], [0], [1], [0, 0, 1, 1], [], []>} : vector<32x32xbf16>, vector<32x32xbf16>, vector<32x32xf32> -> vector<32x32xf32>
    %12 = arith.addf %9, %11 : vector<32x32xf32>
    %c0_14 = arith.constant 0 : index
    %c0_15 = arith.constant 0 : index
    %13 = vector.load %arg2[%c0_14, %c0_15] : memref<32x32xbf16, #tpu.memory_space<vmem>>, vector<32x32xbf16>
    %14 = arith.truncf %7 : vector<32x32xf32> to vector<32x32xbf16>
    %cst_16 = arith.constant dense<0.000000e+00> : vector<32x32xf32>
    %15 = tpu.matmul %13, %14, %cst_16 {dimension_numbers = #tpu.dot_dimension_numbers<[1], [0], [0], [1], [0, 0, 1, 1], [], []>} : vector<32x32xbf16>, vector<32x32xbf16>, vector<32x32xf32> -> vector<32x32xf32>
    %c0_17 = arith.constant 0 : index
    %c0_18 = arith.constant 0 : index
    %16 = vector.load %arg10[%c0_17, %c0_18] : memref<1x32xf32, #tpu.memory_space<vmem>>, vector<1x32xf32>
    %17 = vector.broadcast %16 : vector<1x32xf32> to vector<32x32xf32>
    %18 = arith.addf %15, %17 : vector<32x32xf32>
    %19 = arith.negf %18 : vector<32x32xf32>
    %20 = math.exp %19 : vector<32x32xf32>
    %cst_19 = arith.constant 1.000000e+00 : f32
    %21 = vector.broadcast %cst_19 : f32 to vector<32x32xf32>
    %22 = arith.addf %21, %20 : vector<32x32xf32>
    %23 = arith.divf %21, %22 : vector<32x32xf32>
    %24 = arith.truncf %12 : vector<32x32xf32> to vector<32x32xbf16>
    %cst_20 = arith.constant dense<0.000000e+00> : vector<32x32xf32>
    %25 = tpu.matmul %13, %24, %cst_20 {dimension_numbers = #tpu.dot_dimension_numbers<[1], [0], [0], [1], [0, 0, 1, 1], [], []>} : vector<32x32xbf16>, vector<32x32xbf16>, vector<32x32xf32> -> vector<32x32xf32>
    %c0_21 = arith.constant 0 : index
    %c0_22 = arith.constant 0 : index
    %26 = vector.load %arg11[%c0_21, %c0_22] : memref<1x32xf32, #tpu.memory_space<vmem>>, vector<1x32xf32>
    %27 = vector.broadcast %26 : vector<1x32xf32> to vector<32x32xf32>
    %28 = arith.addf %25, %27 : vector<32x32xf32>
    %29 = arith.negf %28 : vector<32x32xf32>
    %30 = math.exp %29 : vector<32x32xf32>
    %cst_23 = arith.constant 1.000000e+00 : f32
    %31 = vector.broadcast %cst_23 : f32 to vector<32x32xf32>
    %32 = arith.addf %31, %30 : vector<32x32xf32>
    %33 = arith.divf %31, %32 : vector<32x32xf32>
    %34 = vector.extract_strided_slice %23 {offsets = [0, 0], sizes = [16, 32], strides = [1, 1]} : vector<32x32xf32> to vector<16x32xf32>
    %35 = vector.extract_strided_slice %33 {offsets = [0, 0], sizes = [16, 32], strides = [1, 1]} : vector<32x32xf32> to vector<16x32xf32>
    %36 = tpu.concatenate %34, %35 in 0 : vector<16x32xf32>, vector<16x32xf32> -> vector<32x32xf32>
    %37 = vector.extract_strided_slice %23 {offsets = [16, 0], sizes = [16, 32], strides = [1, 1]} : vector<32x32xf32> to vector<16x32xf32>
    %38 = vector.extract_strided_slice %33 {offsets = [16, 0], sizes = [16, 32], strides = [1, 1]} : vector<32x32xf32> to vector<16x32xf32>
    %39 = tpu.concatenate %37, %38 in 0 : vector<16x32xf32>, vector<16x32xf32> -> vector<32x32xf32>
    %c0_24 = arith.constant 0 : index
    %c0_25 = arith.constant 0 : index
    %40 = vector.load %arg6[%c0_24, %c0_25] : memref<4x32xbf16, #tpu.memory_space<vmem>>, vector<4x32xbf16>
    %cst_26 = arith.constant dense<0.000000e+00> : vector<32x32xf32>
    %41 = tpu.matmul %0, %40, %cst_26 {dimension_numbers = #tpu.dot_dimension_numbers<[1], [0], [0], [1], [0, 0, 1, 1], [], []>} : vector<32x4xbf16>, vector<4x32xbf16>, vector<32x32xf32> -> vector<32x32xf32>
    %42 = arith.mulf %36, %1 : vector<32x32xf32>
    %43 = arith.truncf %42 : vector<32x32xf32> to vector<32x32xbf16>
    %c0_27 = arith.constant 0 : index
    %c0_28 = arith.constant 0 : index
    %44 = vector.load %arg9[%c0_27, %c0_28] : memref<32x32xbf16, #tpu.memory_space<vmem>>, vector<32x32xbf16>
    %cst_29 = arith.constant dense<0.000000e+00> : vector<32x32xf32>
    %45 = tpu.matmul %43, %44, %cst_29 {dimension_numbers = #tpu.dot_dimension_numbers<[1], [0], [0], [1], [0, 0, 1, 1], [], []>} : vector<32x32xbf16>, vector<32x32xbf16>, vector<32x32xf32> -> vector<32x32xf32>
    %46 = arith.addf %41, %45 : vector<32x32xf32>
    %c0_30 = arith.constant 0 : index
    %c0_31 = arith.constant 0 : index
    %47 = vector.load %arg3[%c0_30, %c0_31] : memref<32x32xbf16, #tpu.memory_space<vmem>>, vector<32x32xbf16>
    %48 = arith.truncf %46 : vector<32x32xf32> to vector<32x32xbf16>
    %cst_32 = arith.constant dense<0.000000e+00> : vector<32x32xf32>
    %49 = tpu.matmul %47, %48, %cst_32 {dimension_numbers = #tpu.dot_dimension_numbers<[1], [0], [0], [1], [0, 0, 1, 1], [], []>} : vector<32x32xbf16>, vector<32x32xbf16>, vector<32x32xf32> -> vector<32x32xf32>
    %c0_33 = arith.constant 0 : index
    %c0_34 = arith.constant 0 : index
    %50 = vector.load %arg12[%c0_33, %c0_34] : memref<1x32xf32, #tpu.memory_space<vmem>>, vector<1x32xf32>
    %51 = vector.broadcast %50 : vector<1x32xf32> to vector<32x32xf32>
    %52 = arith.addf %49, %51 : vector<32x32xf32>
    %53 = math.tanh %52 : vector<32x32xf32>
    %54 = arith.mulf %39, %1 : vector<32x32xf32>
    %cst_35 = arith.constant 1.000000e+00 : f32
    %55 = vector.broadcast %cst_35 : f32 to vector<32x32xf32>
    %56 = arith.subf %55, %39 : vector<32x32xf32>
    %57 = arith.mulf %56, %53 : vector<32x32xf32>
    %58 = arith.addf %54, %57 : vector<32x32xf32>
    %c0_36 = arith.constant 0 : index
    %c0_37 = arith.constant 0 : index
    %59 = vector.load %arg13[%c0_36, %c0_37] : memref<32x32xf32, #tpu.memory_space<vmem>>, vector<32x32xf32>
    tpu.vector_store %arg13[%c0_36, %c0_37], %58 {strides = array<i32>} : memref<32x32xf32, #tpu.memory_space<vmem>>, vector<32x32xf32>,
    return
  }
}

</mosaic_0001>

<llo_original>
// kernel: tgcn_cell_step.1
$region0: #{tgcn_cell_step.1}
  #allocation0 [shape = 'u32[]', space=smem, size = 0x4, offset = 0x4, fixed_abs, tag = 'smem constant byte address 0x4 - core index']
  #allocation1 [shape = 'u32[144,128]{1,0:T(1,128)}', space=vmem, size = 0x12000, scoped, tag = 'internal scratch']
  %s0 = inlined_call_operand.vmem [shape: bf16[32,4], index: 0, kind: input, shape index: {}]
  %s1 = inlined_call_operand.hbm [shape: f32[32,32], index: 1, kind: input, shape index: {}, may-alias: {1,13}]
  %s2 = inlined_call_operand.vmem [shape: bf16[32,32], index: 2, kind: input, shape index: {}]
  %s3 = inlined_call_operand.hbm [shape: bf16[32,32], index: 3, kind: input, shape index: {}]
  %s4 = inlined_call_operand.vmem [shape: bf16[4,32], index: 4, kind: input, shape index: {}]
  %s5 = inlined_call_operand.vmem [shape: bf16[4,32], index: 5, kind: input, shape index: {}]
  %s6 = inlined_call_operand.vmem [shape: bf16[4,32], index: 6, kind: input, shape index: {}]
  %s7 = inlined_call_operand.vmem [shape: bf16[32,32], index: 7, kind: input, shape index: {}]
  %s8 = inlined_call_operand.vmem [shape: bf16[32,32], index: 8, kind: input, shape index: {}]
  %s9 = inlined_call_operand.hbm [shape: bf16[32,32], index: 9, kind: input, shape index: {}]
  %s10 = inlined_call_operand.hbm [shape: f32[1,32], index: 10, kind: input, shape index: {}]
  %s11 = inlined_call_operand.hbm [shape: f32[1,32], index: 11, kind: input, shape index: {}]
  %s12 = inlined_call_operand.hbm [shape: f32[1,32], index: 12, kind: input, shape index: {}]
  %s13 = inlined_call_operand.hbm [shape: f32[32,32], index: 13, kind: output, shape index: {}, may-alias: {1,13}]
  %s14 = sld [smem:[#allocation0]]
  $region86: #{tgcn_cell_step.1} parent=0
    _
  %s16 = ssub.s32 1, %s14
  %s17 = scalar_select 0, %s16, %s14
  $region1: #{tgcn_cell_step.1} parent=0
    #allocation2 [shape = 'u8[16384]{0}', space=vmem, size = 0x4000, scoped, tag = 'input window, operand 1, single buffered']
    #allocation3 [shape = 's32[1]{0}', space=sflag, size = 0x4, scoped, tag = 'scoped memory for tgcn_cell_step.1']
    #allocation4 [shape = 's32[1]{0}', space=sflag, size = 0x4, scoped, tag = 'scoped memory for tgcn_cell_step.1']
    #allocation5 [shape = 'u8[8192]{0}', space=vmem, size = 0x2000, scoped, tag = 'input window, operand 3, single buffered']
    #allocation6 [shape = 's32[1]{0}', space=sflag, size = 0x4, scoped, tag = 'scoped memory for tgcn_cell_step.1']
    #allocation7 [shape = 'u8[8192]{0}', space=vmem, size = 0x2000, scoped, tag = 'input window, operand 9, single buffered']
    #allocation8 [shape = 'u8[512]{0}', space=vmem, size = 0x400, scoped, tag = 'input window, operand 10, single buffered']
    #allocation9 [shape = 's32[1]{0}', space=sflag, size = 0x4, scoped, tag = 'scoped memory for tgcn_cell_step.1']
    #allocation10 [shape = 'u8[512]{0}', space=vmem, size = 0x400, scoped, tag = 'input window, operand 11, single buffered']
    #allocation11 [shape = 'u8[512]{0}', space=vmem, size = 0x400, scoped, tag = 'input window, operand 12, single buffered']
    #allocation12 [shape = 's32[1]{0}', space=sflag, size = 0x4, scoped, tag = 'scoped memory for tgcn_cell_step.1']
    #allocation13 [shape = 'u8[16384]{0}', space=vmem, size = 0x4000, scoped, tag = 'output window, operand 0, single buffered']
    %18 = vsyncpa [#allocation3], 0
    %19 = vsyncpa [#allocation6], 0
    %20 = vsyncpa [#allocation9], 0
    %21 = vsyncpa [#allocation12], 0
    %22 = vsyncpa [#allocation4], 0
    // Predicated region
    $region2: #{tgcn_cell_step.1} parent=1 // pred_check
      _
    $region3: #{tgcn_cell_step.1} parent=1 // pred_check_branch
      %24 = sbr.rel (0) target = $region5
    $region4: #{tgcn_cell_step.1} parent=1 // pred_region
      _
    $region5: #{tgcn_cell_step.1} parent=1 // pred_fallthru
      _
    // Predicated region
    $region6: #{tgcn_cell_step.1} parent=1 // pred_check
      _
    $region7: #{tgcn_cell_step.1} parent=1 // pred_check_branch
      %26 = sbr.rel (0) target = $region9
    $region8: #{tgcn_cell_step.1} parent=1 // pred_region
      %s28 = ssub.s32 512, 512
      %29 = vsyncadd [#allocation3], %s28
      %s30 = sshll.u32 [#allocation2], 4
      %s31 = int_to_ptr.vmem [resolvable:$true] %s30
      %36 = dma.hbm_to_vmem [thread:$0]  %s1, 512, %s31, [#allocation3], 128, 128, 8
    $region9: #{tgcn_cell_step.1} parent=1 // pred_fallthru
      _
    // Predicated region
    $region10: #{tgcn_cell_step.1} parent=1 // pred_check
      _
    $region11: #{tgcn_cell_step.1} parent=1 // pred_check_branch
      %38 = sbr.rel (0) target = $region13
    $region12: #{tgcn_cell_step.1} parent=1 // pred_region
      _
    $region13: #{tgcn_cell_step.1} parent=1 // pred_fallthru
      _
    // Predicated region
    $region14: #{tgcn_cell_step.1} parent=1 // pred_check
      _
    $region15: #{tgcn_cell_step.1} parent=1 // pred_check_branch
      %40 = sbr.rel (0) target = $region17
    $region16: #{tgcn_cell_step.1} parent=1 // pred_region
      %s42 = ssub.s32 256, 256
      %43 = vsyncadd [#allocation6], %s42
      %s44 = sshll.u32 [#allocation5], 4
      %s45 = int_to_ptr.vmem [resolvable:$true] %s44
      %50 = dma.hbm_to_vmem [thread:$0]  %s3, 256, %s45, [#allocation6], 64, 64, 4
    $region17: #{tgcn_cell_step.1} parent=1 // pred_fallthru
      _
    // Predicated region
    $region18: #{tgcn_cell_step.1} parent=1 // pred_check
      _
    $region19: #{tgcn_cell_step.1} parent=1 // pred_check_branch
      %52 = sbr.rel (0) target = $region21
    $region20: #{tgcn_cell_step.1} parent=1 // pred_region
      _
    $region21: #{tgcn_cell_step.1} parent=1 // pred_fallthru
      _
    // Predicated region
    $region22: #{tgcn_cell_step.1} parent=1 // pred_check
      _
    $region23: #{tgcn_cell_step.1} parent=1 // pred_check_branch
      %54 = sbr.rel (0) target = $region25
    $region24: #{tgcn_cell_step.1} parent=1 // pred_region
      _
    $region25: #{tgcn_cell_step.1} parent=1 // pred_fallthru
      _
    // Predicated region
    $region26: #{tgcn_cell_step.1} parent=1 // pred_check
      _
    $region27: #{tgcn_cell_step.1} parent=1 // pred_check_branch
      %56 = sbr.rel (0) target = $region29
    $region28: #{tgcn_cell_step.1} parent=1 // pred_region
      _
    $region29: #{tgcn_cell_step.1} parent=1 // pred_fallthru
      _
    // Predicated region
    $region30: #{tgcn_cell_step.1} parent=1 // pred_check
      _
    $region31: #{tgcn_cell_step.1} parent=1 // pred_check_branch
      %58 = sbr.rel (0) target = $region33
    $region32: #{tgcn_cell_step.1} parent=1 // pred_region
      _
    $region33: #{tgcn_cell_step.1} parent=1 // pred_fallthru
      _
    // Predicated region
    $region34: #{tgcn_cell_step.1} parent=1 // pred_check
      _
    $region35: #{tgcn_cell_step.1} parent=1 // pred_check_branch
      %60 = sbr.rel (0) target = $region37
    $region36: #{tgcn_cell_step.1} parent=1 // pred_region
      _
    $region37: #{tgcn_cell_step.1} parent=1 // pred_fallthru
      _
    // Predicated region
    $region38: #{tgcn_cell_step.1} parent=1 // pred_check
      _
    $region39: #{tgcn_cell_step.1} parent=1 // pred_check_branch
      %62 = sbr.rel (0) target = $region41
    $region40: #{tgcn_cell_step.1} parent=1 // pred_region
      %s64 = ssub.s32 256, 256
      %65 = vsyncadd [#allocation6], %s64
      %s66 = sshll.u32 [#allocation7], 4
      %s67 = int_to_ptr.vmem [resolvable:$true] %s66
      %72 = dma.hbm_to_vmem [thread:$0]  %s9, 256, %s67, [#allocation6], 64, 64, 4
    $region41: #{tgcn_cell_step.1} parent=1 // pred_fallthru
      _
    // Predicated region
    $region42: #{tgcn_cell_step.1} parent=1 // pred_check
      _
    $region43: #{tgcn_cell_step.1} parent=1 // pred_check_branch
      %74 = sbr.rel (0) target = $region45
    $region44: #{tgcn_cell_step.1} parent=1 // pred_region
      %s76 = ssub.s32 16, 16
      %77 = vsyncadd [#allocation9], %s76
      %s79 = sshll.u32 [#allocation8], 4
      %s80 = int_to_ptr.vmem [resolvable:$true] %s79
      %82 = dma.hbm_to_vmem [thread:$0]  %s10, 16, %s80, [#allocation9]
    $region45: #{tgcn_cell_step.1} parent=1 // pred_fallthru
      _
    // Predicated region
    $region46: #{tgcn_cell_step.1} parent=1 // pred_check
      _
    $region47: #{tgcn_cell_step.1} parent=1 // pred_check_branch
      %84 = sbr.rel (0) target = $region49
    $region48: #{tgcn_cell_step.1} parent=1 // pred_region
      %s86 = ssub.s32 16, 16
      %87 = vsyncadd [#allocation9], %s86
      %s89 = sshll.u32 [#allocation10], 4
      %s90 = int_to_ptr.vmem [resolvable:$true] %s89
      %92 = dma.hbm_to_vmem [thread:$0]  %s11, 16, %s90, [#allocation9]
    $region49: #{tgcn_cell_step.1} parent=1 // pred_fallthru
      _
    // Predicated region
    $region50: #{tgcn_cell_step.1} parent=1 // pred_check
      _
    $region51: #{tgcn_cell_step.1} parent=1 // pred_check_branch
      %94 = sbr.rel (0) target = $region53
    $region52: #{tgcn_cell_step.1} parent=1 // pred_region
      %s96 = ssub.s32 16, 16
      %97 = vsyncadd [#allocation12], %s96
      %s99 = sshll.u32 [#allocation11], 4
      %s100 = int_to_ptr.vmem [resolvable:$true] %s99
      %102 = dma.hbm_to_vmem [thread:$0]  %s12, 16, %s100, [#allocation12]
    $region53: #{tgcn_cell_step.1} parent=1 // pred_fallthru
      _
    // Predicated region
    $region54: #{tgcn_cell_step.1} parent=1 // pred_check
      _
    $region55: #{tgcn_cell_step.1} parent=1 // pred_check_branch
      %104 = sbr.rel (0) target = $region57
    $region56: #{tgcn_cell_step.1} parent=1 // pred_region
      %105 = dma.done [#allocation3], 512
    $region57: #{tgcn_cell_step.1} parent=1 // pred_fallthru
      _
    // Predicated region
    $region58: #{tgcn_cell_step.1} parent=1 // pred_check
      _
    $region59: #{tgcn_cell_step.1} parent=1 // pred_check_branch
      %107 = sbr.rel (0) target = $region61
    $region60: #{tgcn_cell_step.1} parent=1 // pred_region
      %108 = dma.done [#allocation6], 256
    $region61: #{tgcn_cell_step.1} parent=1 // pred_fallthru
      _
    // Predicated region
    $region62: #{tgcn_cell_step.1} parent=1 // pred_check
      _
    $region63: #{tgcn_cell_step.1} parent=1 // pred_check_branch
      %110 = sbr.rel (0) target = $region65
    $region64: #{tgcn_cell_step.1} parent=1 // pred_region
      %111 = dma.done [#allocation6], 256
    $region65: #{tgcn_cell_step.1} parent=1 // pred_fallthru
      _
    // Predicated region
    $region66: #{tgcn_cell_step.1} parent=1 // pred_check
      _
    $region67: #{tgcn_cell_step.1} parent=1 // pred_check_branch
      %113 = sbr.rel (0) target = $region69
    $region68: #{tgcn_cell_step.1} parent=1 // pred_region
      %114 = dma.done [#allocation9], 16
    $region69: #{tgcn_cell_step.1} parent=1 // pred_fallthru
      _
    // Predicated region
    $region70: #{tgcn_cell_step.1} parent=1 // pred_check
      _
    $region71: #{tgcn_cell_step.1} parent=1 // pred_check_branch
      %116 = sbr.rel (0) target = $region73
    $region72: #{tgcn_cell_step.1} parent=1 // pred_region
      %117 = dma.done [#allocation9], 16
    $region73: #{tgcn_cell_step.1} parent=1 // pred_fallthru
      _
    // Predicated region
    $region74: #{tgcn_cell_step.1} parent=1 // pred_check
      _
    $region75: #{tgcn_cell_step.1} parent=1 // pred_check_branch
      %119 = sbr.rel (0) target = $region77
    $region76: #{tgcn_cell_step.1} parent=1 // pred_region
      %120 = dma.done [#allocation12], 16
    $region77: #{tgcn_cell_step.1} parent=1 // pred_fallthru
      _
    %v122 = vld [vmem:[%s0] sm:$0xf]
    %v123 = vld [vmem:[%s0 + $0x4] sm:$0xf]
    %v124 = vld [vmem:[%s0 + $0x8] sm:$0xf]
    %v125 = vld [vmem:[%s0 + $0xc] sm:$0xf]
    %v126 = vld [vmem:[#allocation2] sm:$0xff]
    %v127 = vld [vmem:[#allocation2 + $0x8] sm:$0xff]
    %v128 = vld [vmem:[#allocation2 + $0x10] sm:$0xff]
    %v129 = vld [vmem:[#allocation2 + $0x18] sm:$0xff]
    %v130 = vpack.c.bf16 %v127, %v126
    %v131 = vpack.c.bf16 %v129, %v128
    %v132 = vld [vmem:[%s4] sm:$0x3]
    %v133 = vld [vmem:[%s7] sm:$0xf]
    %v134 = vld [vmem:[%s7 + $0x4] sm:$0xf]
    %v135 = vld [vmem:[%s7 + $0x8] sm:$0xf]
    %v136 = vld [vmem:[%s7 + $0xc] sm:$0xf]
    %v141 = vunpack.c.l.b16 %v133
    %v142 = vunpack.c.l.b16 %v134
    %v143 = vunpack.c.l.b16 %v135
    %v144 = vunpack.c.l.b16 %v136
    %v145 = vpack.c.b16 %v142, %v141
    %v146 = vpack.c.b16 %v144, %v143
    %vm149 = vcmask 261120
    %v151 = vsel %vm149, %v130, 0
    %v154 = vsel %vm149, %v131, 0
    %156 = vmatprep.subr.bf16.mxu0 0
    %157 = vmatpush1.bf16.msra.mxu0 %v145
    %158 = vmatprep.subr.bf16.mxu0 0
    %159 = vmatpush1.bf16.msra.mxu0 %v146
    %160 = vmatprep.subr.bf16.mxu0 0
    %161 = vmatpush1.bf16.msra.mxu0 0
    %162 = vmatprep.subr.bf16.mxu0 0
    %163 = vmatpush1.bf16.msra.mxu0 0
    %164 = vmatprep.subr.bf16.mxu0 0
    %165 = vmatpush1.bf16.msra.mxu0 0
    %166 = vmatprep.subr.bf16.mxu0 0
    %167 = vmatpush1.bf16.msra.mxu0 0
    %168 = vmatprep.subr.bf16.mxu0 0
    %169 = vmatpush1.bf16.msra.mxu0 0
    %170 = vmatprep.subr.bf16.mxu0 0
    %171 = vmatpush1.bf16.msra.mxu0 0
    %172 = vmatprep.subr.bf16.mxu0 0
    %173 = vmatpush1.bf16.msra.mxu0 0
    %174 = vmatprep.subr.bf16.mxu0 0
    %175 = vmatpush1.bf16.msra.mxu0 0
    %176 = vmatprep.subr.bf16.mxu0 0
    %177 = vmatpush1.bf16.msra.mxu0 0
    %178 = vmatprep.subr.bf16.mxu0 0
    %179 = vmatpush1.bf16.msra.mxu0 0
    %180 = vmatprep.subr.bf16.mxu0 0
    %181 = vmatpush1.bf16.msra.mxu0 0
    %182 = vmatprep.subr.bf16.mxu0 0
    %183 = vmatpush1.bf16.msra.mxu0 0
    %184 = vmatprep.subr.bf16.mxu0 0
    %185 = vmatpush1.bf16.msra.mxu0 0
    %186 = vmatprep.subr.bf16.mxu0 0
    %187 = vmatpush1.bf16.msra.mxu0 0
    %188 = vmatprep.mubr.bf16.mxu0 0
    %189 = vmatmul.mubr.bf16.gmra.mrb[0].mxu0 %v151
    %v190 = vpop.f32.mrb[0].mxu0
    %v191 = vadd.f32 0.0, %v190
    %v192 = vpop.f32.mrb[0].mxu0
    %v193 = vpop.f32.mrb[0].mxu0
    %v194 = vadd.f32 0.0, %v193
    %v195 = vpop.f32.mrb[0].mxu0
    %196 = vmatprep.mubr.bf16.mxu0 0
    %197 = vmatmul.mubr.bf16.gmra.mrb[0].mxu0 %v154
    %v198 = vpop.f32.mrb[0].mxu0
    %v199 = vadd.f32 0.0, %v198
    %v200 = vpop.f32.mrb[0].mxu0
    %v201 = vpop.f32.mrb[0].mxu0
    %v202 = vadd.f32 0.0, %v201
    %v203 = vpop.f32.mrb[0].mxu0
    %204 = vdwg.mxu0
    %v209 = vunpack.c.l.b16 %v122
    %v210 = vunpack.c.l.b16 %v123
    %v211 = vunpack.c.l.b16 %v124
    %v212 = vunpack.c.l.b16 %v125
    %v213 = vpack.c.b16 %v210, %v209
    %v214 = vpack.c.b16 %v212, %v211
    %vm215 = vcmask 31744
    %v217 = vsel %vm215, %v213, 0
    %v220 = vsel %vm215, %v214, 0
    %vm222 = vcmask 1041408
    %v224 = vsel %vm222, %v132, 0
    %226 = vmatprep.subr.bf16.mxu0 0
    %227 = vmatpush1.bf16.msra.mxu0 %v224
    %228 = vmatprep.subr.bf16.mxu0 0
    %229 = vmatpush1.bf16.msra.mxu0 0
    %230 = vmatprep.subr.bf16.mxu0 0
    %231 = vmatpush1.bf16.msra.mxu0 0
    %232 = vmatprep.subr.bf16.mxu0 0
    %233 = vmatpush1.bf16.msra.mxu0 0
    %234 = vmatprep.subr.bf16.mxu0 0
    %235 = vmatpush1.bf16.msra.mxu0 0
    %236 = vmatprep.subr.bf16.mxu0 0
    %237 = vmatpush1.bf16.msra.mxu0 0
    %238 = vmatprep.subr.bf16.mxu0 0
    %239 = vmatpush1.bf16.msra.mxu0 0
    %240 = vmatprep.subr.bf16.mxu0 0
    %241 = vmatpush1.bf16.msra.mxu0 0
    %242 = vmatprep.subr.bf16.mxu0 0
    %243 = vmatpush1.bf16.msra.mxu0 0
    %244 = vmatprep.subr.bf16.mxu0 0
    %245 = vmatpush1.bf16.msra.mxu0 0
    %246 = vmatprep.subr.bf16.mxu0 0
    %247 = vmatpush1.bf16.msra.mxu0 0
    %248 = vmatprep.subr.bf16.mxu0 0
    %249 = vmatpush1.bf16.msra.mxu0 0
    %250 = vmatprep.subr.bf16.mxu0 0
    %251 = vmatpush1.bf16.msra.mxu0 0
    %252 = vmatprep.subr.bf16.mxu0 0
    %253 = vmatpush1.bf16.msra.mxu0 0
    %254 = vmatprep.subr.bf16.mxu0 0
    %255 = vmatpush1.bf16.msra.mxu0 0
    %256 = vmatprep.subr.bf16.mxu0 0
    %257 = vmatpush1.bf16.msra.mxu0 0
    %258 = vmatprep.mubr.bf16.mxu0 0
    %259 = vmatmul.mubr.bf16.gmra.mrb[0].mxu0 %v217
    %v260 = vpop.f32.mrb[0].mxu0
    %v261 = vadd.f32 %v191, %v260
    %v262 = vpop.f32.mrb[0].mxu0
    %v263 = vpop.f32.mrb[0].mxu0
    %v264 = vadd.f32 %v194, %v263
    %v265 = vpop.f32.mrb[0].mxu0
    %266 = vmatprep.mubr.bf16.mxu0 0
    %267 = vmatmul.mubr.bf16.gmra.mrb[0].mxu0 %v220
    %v268 = vpop.f32.mrb[0].mxu0
    %v269 = vadd.f32 %v199, %v268
    %v270 = vpop.f32.mrb[0].mxu0
    %v271 = vpop.f32.mrb[0].mxu0
    %v272 = vadd.f32 %v202, %v271
    %v273 = vpop.f32.mrb[0].mxu0
    %274 = vdwg.mxu0
    %v275 = vld [vmem:[%s5] sm:$0x3]
    %v276 = vld [vmem:[%s8] sm:$0xf]
    %v277 = vld [vmem:[%s8 + $0x4] sm:$0xf]
    %v278 = vld [vmem:[%s8 + $0x8] sm:$0xf]
    %v279 = vld [vmem:[%s8 + $0xc] sm:$0xf]
    %v284 = vunpack.c.l.b16 %v276
    %v285 = vunpack.c.l.b16 %v277
    %v286 = vunpack.c.l.b16 %v278
    %v287 = vunpack.c.l.b16 %v279
    %v288 = vpack.c.b16 %v285, %v284
    %v289 = vpack.c.b16 %v287, %v286
    %292 = vmatprep.subr.bf16.mxu0 0
    %293 = vmatpush1.bf16.msra.mxu0 %v288
    %294 = vmatprep.subr.bf16.mxu0 0
    %295 = vmatpush1.bf16.msra.mxu0 %v289
    %296 = vmatprep.subr.bf16.mxu0 0
    %297 = vmatpush1.bf16.msra.mxu0 0
    %298 = vmatprep.subr.bf16.mxu0 0
    %299 = vmatpush1.bf16.msra.mxu0 0
    %300 = vmatprep.subr.bf16.mxu0 0
    %301 = vmatpush1.bf16.msra.mxu0 0
    %302 = vmatprep.subr.bf16.mxu0 0
    %303 = vmatpush1.bf16.msra.mxu0 0
    %304 = vmatprep.subr.bf16.mxu0 0
    %305 = vmatpush1.bf16.msra.mxu0 0
    %306 = vmatprep.subr.bf16.mxu0 0
    %307 = vmatpush1.bf16.msra.mxu0 0
    %308 = vmatprep.subr.bf16.mxu0 0
    %309 = vmatpush1.bf16.msra.mxu0 0
    %310 = vmatprep.subr.bf16.mxu0 0
    %311 = vmatpush1.bf16.msra.mxu0 0
    %312 = vmatprep.subr.bf16.mxu0 0
    %313 = vmatpush1.bf16.msra.mxu0 0
    %314 = vmatprep.subr.bf16.mxu0 0
    %315 = vmatpush1.bf16.msra.mxu0 0
    %316 = vmatprep.subr.bf16.mxu0 0
    %317 = vmatpush1.bf16.msra.mxu0 0
    %318 = vmatprep.subr.bf16.mxu0 0
    %319 = vmatpush1.bf16.msra.mxu0 0
    %320 = vmatprep.subr.bf16.mxu0 0
    %321 = vmatpush1.bf16.msra.mxu0 0
    %322 = vmatprep.subr.bf16.mxu0 0
    %323 = vmatpush1.bf16.msra.mxu0 0
    %324 = vmatprep.mubr.bf16.mxu0 0
    %325 = vmatmul.mubr.bf16.gmra.mrb[0].mxu0 %v151
    %v326 = vpop.f32.mrb[0].mxu0
    %v327 = vadd.f32 0.0, %v326
    %v328 = vpop.f32.mrb[0].mxu0
    %v329 = vpop.f32.mrb[0].mxu0
    %v330 = vadd.f32 0.0, %v329
    %v331 = vpop.f32.mrb[0].mxu0
    %332 = vmatprep.mubr.bf16.mxu0 0
    %333 = vmatmul.mubr.bf16.gmra.mrb[0].mxu0 %v154
    %v334 = vpop.f32.mrb[0].mxu0
    %v335 = vadd.f32 0.0, %v334
    %v336 = vpop.f32.mrb[0].mxu0
    %v337 = vpop.f32.mrb[0].mxu0
    %v338 = vadd.f32 0.0, %v337
    %v339 = vpop.f32.mrb[0].mxu0
    %340 = vdwg.mxu0
    %v342 = vsel %vm222, %v275, 0
    %344 = vmatprep.subr.bf16.mxu0 0
    %345 = vmatpush1.bf16.msra.mxu0 %v342
    %346 = vmatprep.subr.bf16.mxu0 0
    %347 = vmatpush1.bf16.msra.mxu0 0
    %348 = vmatprep.subr.bf16.mxu0 0
    %349 = vmatpush1.bf16.msra.mxu0 0
    %350 = vmatprep.subr.bf16.mxu0 0
    %351 = vmatpush1.bf16.msra.mxu0 0
    %352 = vmatprep.subr.bf16.mxu0 0
    %353 = vmatpush1.bf16.msra.mxu0 0
    %354 = vmatprep.subr.bf16.mxu0 0
    %355 = vmatpush1.bf16.msra.mxu0 0
    %356 = vmatprep.subr.bf16.mxu0 0
    %357 = vmatpush1.bf16.msra.mxu0 0
    %358 = vmatprep.subr.bf16.mxu0 0
    %359 = vmatpush1.bf16.msra.mxu0 0
    %360 = vmatprep.subr.bf16.mxu0 0
    %361 = vmatpush1.bf16.msra.mxu0 0
    %362 = vmatprep.subr.bf16.mxu0 0
    %363 = vmatpush1.bf16.msra.mxu0 0
    %364 = vmatprep.subr.bf16.mxu0 0
    %365 = vmatpush1.bf16.msra.mxu0 0
    %366 = vmatprep.subr.bf16.mxu0 0
    %367 = vmatpush1.bf16.msra.mxu0 0
    %368 = vmatprep.subr.bf16.mxu0 0
    %369 = vmatpush1.bf16.msra.mxu0 0
    %370 = vmatprep.subr.bf16.mxu0 0
    %371 = vmatpush1.bf16.msra.mxu0 0
    %372 = vmatprep.subr.bf16.mxu0 0
    %373 = vmatpush1.bf16.msra.mxu0 0
    %374 = vmatprep.subr.bf16.mxu0 0
    %375 = vmatpush1.bf16.msra.mxu0 0
    %376 = vmatprep.mubr.bf16.mxu0 0
    %377 = vmatmul.mubr.bf16.gmra.mrb[0].mxu0 %v217
    %v378 = vpop.f32.mrb[0].mxu0
    %v379 = vadd.f32 %v327, %v378
    %v380 = vpop.f32.mrb[0].mxu0
    %v381 = vpop.f32.mrb[0].mxu0
    %v382 = vadd.f32 %v330, %v381
    %v383 = vpop.f32.mrb[0].mxu0
    %384 = vmatprep.mubr.bf16.mxu0 0
    %385 = vmatmul.mubr.bf16.gmra.mrb[0].mxu0 %v220
    %v386 = vpop.f32.mrb[0].mxu0
    %v387 = vadd.f32 %v335, %v386
    %v388 = vpop.f32.mrb[0].mxu0
    %v389 = vpop.f32.mrb[0].mxu0
    %v390 = vadd.f32 %v338, %v389
    %v391 = vpop.f32.mrb[0].mxu0
    %392 = vdwg.mxu0
    %v393 = vld [vmem:[%s2] sm:$0xf]
    %v394 = vld [vmem:[%s2 + $0x4] sm:$0xf]
    %v395 = vld [vmem:[%s2 + $0x8] sm:$0xf]
    %v396 = vld [vmem:[%s2 + $0xc] sm:$0xf]
    %v397 = vpack.c.bf16 %v264, %v261
    %v398 = vpack.c.bf16 %v272, %v269
    %v399 = vld [vmem:[#allocation8] sm:$0x1]
    %v401 = vlaneseq
    %v402 = vshrl.u32 %v401, 7
    %v403 = vsub.s32 0, %v402
    %v404 = vrot.slane %v399, %v403
    %v410 = vunpack.c.l.b16 %v393
    %v411 = vunpack.c.l.b16 %v394
    %v412 = vunpack.c.l.b16 %v395
    %v413 = vunpack.c.l.b16 %v396
    %v414 = vpack.c.b16 %v411, %v410
    %v415 = vpack.c.b16 %v413, %v412
    %v417 = vsel %vm149, %v414, 0
    %v420 = vsel %vm149, %v415, 0
    %422 = vmatprep.subr.bf16.mxu0 0
    %423 = vmatpush1.bf16.msra.mxu0 %v397
    %424 = vmatprep.subr.bf16.mxu0 0
    %425 = vmatpush1.bf16.msra.mxu0 %v398
    %426 = vmatprep.subr.bf16.mxu0 0
    %427 = vmatpush1.bf16.msra.mxu0 0
    %428 = vmatprep.subr.bf16.mxu0 0
    %429 = vmatpush1.bf16.msra.mxu0 0
    %430 = vmatprep.subr.bf16.mxu0 0
    %431 = vmatpush1.bf16.msra.mxu0 0
    %432 = vmatprep.subr.bf16.mxu0 0
    %433 = vmatpush1.bf16.msra.mxu0 0
    %434 = vmatprep.subr.bf16.mxu0 0
    %435 = vmatpush1.bf16.msra.mxu0 0
    %436 = vmatprep.subr.bf16.mxu0 0
    %437 = vmatpush1.bf16.msra.mxu0 0
    %438 = vmatprep.subr.bf16.mxu0 0
    %439 = vmatpush1.bf16.msra.mxu0 0
    %440 = vmatprep.subr.bf16.mxu0 0
    %441 = vmatpush1.bf16.msra.mxu0 0
    %442 = vmatprep.subr.bf16.mxu0 0
    %443 = vmatpush1.bf16.msra.mxu0 0
    %444 = vmatprep.subr.bf16.mxu0 0
    %445 = vmatpush1.bf16.msra.mxu0 0
    %446 = vmatprep.subr.bf16.mxu0 0
    %447 = vmatpush1.bf16.msra.mxu0 0
    %448 = vmatprep.subr.bf16.mxu0 0
    %449 = vmatpush1.bf16.msra.mxu0 0
    %450 = vmatprep.subr.bf16.mxu0 0
    %451 = vmatpush1.bf16.msra.mxu0 0
    %452 = vmatprep.subr.bf16.mxu0 0
    %453 = vmatpush1.bf16.msra.mxu0 0
    %454 = vmatprep.mubr.bf16.mxu0 0
    %455 = vmatmul.mubr.bf16.gmra.mrb[0].mxu0 %v417
    %v456 = vpop.f32.mrb[0].mxu0
    %v457 = vadd.f32 %v404, %v456
    %v458 = vpop.f32.mrb[0].mxu0
    %v459 = vpop.f32.mrb[0].mxu0
    %v460 = vadd.f32 %v404, %v459
    %v461 = vpop.f32.mrb[0].mxu0
    %462 = vmatprep.mubr.bf16.mxu0 0
    %463 = vmatmul.mubr.bf16.gmra.mrb[0].mxu0 %v420
    %v464 = vpop.f32.mrb[0].mxu0
    %v465 = vadd.f32 %v404, %v464
    %v466 = vpop.f32.mrb[0].mxu0
    %v467 = vpop.f32.mrb[0].mxu0
    %v468 = vadd.f32 %v404, %v467
    %v469 = vpop.f32.mrb[0].mxu0
    %470 = vdwg.mxu0
    %v471 = vxor.u32 %v457, 2147483648
    %v472 = vxor.u32 %v460, 2147483648
    %v473 = vxor.u32 %v465, 2147483648
    %v474 = vxor.u32 %v468, 2147483648
    %v475 = vmul.f32 %v471, 1.442695
    %v476 = vpow.pop %v475
    %v477 = vmul.f32 %v472, 1.442695
    %v478 = vpow.pop %v477
    %v479 = vmul.f32 %v473, 1.442695
    %v480 = vpow.pop %v479
    %v481 = vmul.f32 %v474, 1.442695
    %v482 = vpow.pop %v481
    %v483 = vadd.f32 %v476, 1.0
    %v484 = vadd.f32 %v478, 1.0
    %v485 = vadd.f32 %v480, 1.0
    %v486 = vadd.f32 %v482, 1.0
    %v487 = vrcp.pop %v483
    %v488 = vmul.f32 1.0, %v487
    %v489 = vrcp.pop %v484
    %v490 = vmul.f32 1.0, %v489
    %v491 = vrcp.pop %v485
    %v492 = vmul.f32 1.0, %v491
    %v493 = vrcp.pop %v486
    %v494 = vmul.f32 1.0, %v493
    %v495 = vpack.c.bf16 %v382, %v379
    %v496 = vpack.c.bf16 %v390, %v387
    %v497 = vld [vmem:[#allocation10] sm:$0x1]
    %v499 = vlaneseq
    %v500 = vshrl.u32 %v499, 7
    %v501 = vsub.s32 0, %v500
    %v502 = vrot.slane %v497, %v501
    %504 = vmatprep.subr.bf16.mxu0 0
    %505 = vmatpush1.bf16.msra.mxu0 %v495
    %506 = vmatprep.subr.bf16.mxu0 0
    %507 = vmatpush1.bf16.msra.mxu0 %v496
    %508 = vmatprep.subr.bf16.mxu0 0
    %509 = vmatpush1.bf16.msra.mxu0 0
    %510 = vmatprep.subr.bf16.mxu0 0
    %511 = vmatpush1.bf16.msra.mxu0 0
    %512 = vmatprep.subr.bf16.mxu0 0
    %513 = vmatpush1.bf16.msra.mxu0 0
    %514 = vmatprep.subr.bf16.mxu0 0
    %515 = vmatpush1.bf16.msra.mxu0 0
    %516 = vmatprep.subr.bf16.mxu0 0
    %517 = vmatpush1.bf16.msra.mxu0 0
    %518 = vmatprep.subr.bf16.mxu0 0
    %519 = vmatpush1.bf16.msra.mxu0 0
    %520 = vmatprep.subr.bf16.mxu0 0
    %521 = vmatpush1.bf16.msra.mxu0 0
    %522 = vmatprep.subr.bf16.mxu0 0
    %523 = vmatpush1.bf16.msra.mxu0 0
    %524 = vmatprep.subr.bf16.mxu0 0
    %525 = vmatpush1.bf16.msra.mxu0 0
    %526 = vmatprep.subr.bf16.mxu0 0
    %527 = vmatpush1.bf16.msra.mxu0 0
    %528 = vmatprep.subr.bf16.mxu0 0
    %529 = vmatpush1.bf16.msra.mxu0 0
    %530 = vmatprep.subr.bf16.mxu0 0
    %531 = vmatpush1.bf16.msra.mxu0 0
    %532 = vmatprep.subr.bf16.mxu0 0
    %533 = vmatpush1.bf16.msra.mxu0 0
    %534 = vmatprep.subr.bf16.mxu0 0
    %535 = vmatpush1.bf16.msra.mxu0 0
    %536 = vmatprep.mubr.bf16.mxu0 0
    %537 = vmatmul.mubr.bf16.gmra.mrb[0].mxu0 %v417
    %v538 = vpop.f32.mrb[0].mxu0
    %v539 = vadd.f32 %v502, %v538
    %v540 = vpop.f32.mrb[0].mxu0
    %v541 = vpop.f32.mrb[0].mxu0
    %v542 = vadd.f32 %v502, %v541
    %v543 = vpop.f32.mrb[0].mxu0
    %544 = vmatprep.mubr.bf16.mxu0 0
    %545 = vmatmul.mubr.bf16.gmra.mrb[0].mxu0 %v420
    %v546 = vpop.f32.mrb[0].mxu0
    %v547 = vadd.f32 %v502, %v546
    %v548 = vpop.f32.mrb[0].mxu0
    %v549 = vpop.f32.mrb[0].mxu0
    %v550 = vadd.f32 %v502, %v549
    %v551 = vpop.f32.mrb[0].mxu0
    %552 = vdwg.mxu0
    %v553 = vxor.u32 %v539, 2147483648
    %v554 = vxor.u32 %v542, 2147483648
    %v555 = vxor.u32 %v547, 2147483648
    %v556 = vxor.u32 %v550, 2147483648
    %v557 = vmul.f32 %v553, 1.442695
    %v558 = vpow.pop %v557
    %v559 = vmul.f32 %v554, 1.442695
    %v560 = vpow.pop %v559
    %v561 = vmul.f32 %v555, 1.442695
    %v562 = vpow.pop %v561
    %v563 = vmul.f32 %v556, 1.442695
    %v564 = vpow.pop %v563
    %v565 = vadd.f32 %v558, 1.0
    %v566 = vadd.f32 %v560, 1.0
    %v567 = vadd.f32 %v562, 1.0
    %v568 = vadd.f32 %v564, 1.0
    %v569 = vrcp.pop %v565
    %v570 = vmul.f32 1.0, %v569
    %v571 = vrcp.pop %v566
    %v572 = vmul.f32 1.0, %v571
    %v573 = vrcp.pop %v567
    %v574 = vmul.f32 1.0, %v573
    %v575 = vrcp.pop %v568
    %v576 = vmul.f32 1.0, %v575
    %v577 = vld [vmem:[%s6] sm:$0x3]
    %v578 = vmul.f32 %v488, %v126
    %v579 = vmul.f32 %v490, %v127
    %v580 = vmul.f32 %v570, %v128
    %v581 = vmul.f32 %v572, %v129
    %v582 = vpack.c.bf16 %v579, %v578
    %v583 = vpack.c.bf16 %v581, %v580
    %v584 = vld [vmem:[#allocation7] sm:$0xf]
    %v585 = vld [vmem:[#allocation7 + $0x4] sm:$0xf]
    %v586 = vld [vmem:[#allocation7 + $0x8] sm:$0xf]
    %v587 = vld [vmem:[#allocation7 + $0xc] sm:$0xf]
    %v592 = vunpack.c.l.b16 %v584
    %v593 = vunpack.c.l.b16 %v585
    %v594 = vunpack.c.l.b16 %v586
    %v595 = vunpack.c.l.b16 %v587
    %v596 = vpack.c.b16 %v593, %v592
    %v597 = vpack.c.b16 %v595, %v594
    %v601 = vsel %vm149, %v582, 0
    %v604 = vsel %vm149, %v583, 0
    %606 = vmatprep.subr.bf16.mxu0 0
    %607 = vmatpush1.bf16.msra.mxu0 %v596
    %608 = vmatprep.subr.bf16.mxu0 0
    %609 = vmatpush1.bf16.msra.mxu0 %v597
    %610 = vmatprep.subr.bf16.mxu0 0
    %611 = vmatpush1.bf16.msra.mxu0 0
    %612 = vmatprep.subr.bf16.mxu0 0
    %613 = vmatpush1.bf16.msra.mxu0 0
    %614 = vmatprep.subr.bf16.mxu0 0
    %615 = vmatpush1.bf16.msra.mxu0 0
    %616 = vmatprep.subr.bf16.mxu0 0
    %617 = vmatpush1.bf16.msra.mxu0 0
    %618 = vmatprep.subr.bf16.mxu0 0
    %619 = vmatpush1.bf16.msra.mxu0 0
    %620 = vmatprep.subr.bf16.mxu0 0
    %621 = vmatpush1.bf16.msra.mxu0 0
    %622 = vmatprep.subr.bf16.mxu0 0
    %623 = vmatpush1.bf16.msra.mxu0 0
    %624 = vmatprep.subr.bf16.mxu0 0
    %625 = vmatpush1.bf16.msra.mxu0 0
    %626 = vmatprep.subr.bf16.mxu0 0
    %627 = vmatpush1.bf16.msra.mxu0 0
    %628 = vmatprep.subr.bf16.mxu0 0
    %629 = vmatpush1.bf16.msra.mxu0 0
    %630 = vmatprep.subr.bf16.mxu0 0
    %631 = vmatpush1.bf16.msra.mxu0 0
    %632 = vmatprep.subr.bf16.mxu0 0
    %633 = vmatpush1.bf16.msra.mxu0 0
    %634 = vmatprep.subr.bf16.mxu0 0
    %635 = vmatpush1.bf16.msra.mxu0 0
    %636 = vmatprep.subr.bf16.mxu0 0
    %637 = vmatpush1.bf16.msra.mxu0 0
    %638 = vmatprep.mubr.bf16.mxu0 0
    %639 = vmatmul.mubr.bf16.gmra.mrb[0].mxu0 %v601
    %v640 = vpop.f32.mrb[0].mxu0
    %v641 = vadd.f32 0.0, %v640
    %v642 = vpop.f32.mrb[0].mxu0
    %v643 = vpop.f32.mrb[0].mxu0
    %v644 = vadd.f32 0.0, %v643
    %v645 = vpop.f32.mrb[0].mxu0
    %646 = vmatprep.mubr.bf16.mxu0 0
    %647 = vmatmul.mubr.bf16.gmra.mrb[0].mxu0 %v604
    %v648 = vpop.f32.mrb[0].mxu0
    %v649 = vadd.f32 0.0, %v648
    %v650 = vpop.f32.mrb[0].mxu0
    %v651 = vpop.f32.mrb[0].mxu0
    %v652 = vadd.f32 0.0, %v651
    %v653 = vpop.f32.mrb[0].mxu0
    %654 = vdwg.mxu0
    %v656 = vsel %vm222, %v577, 0
    %658 = vmatprep.subr.bf16.mxu0 0
    %659 = vmatpush1.bf16.msra.mxu0 %v656
    %660 = vmatprep.subr.bf16.mxu0 0
    %661 = vmatpush1.bf16.msra.mxu0 0
    %662 = vmatprep.subr.bf16.mxu0 0
    %663 = vmatpush1.bf16.msra.mxu0 0
    %664 = vmatprep.subr.bf16.mxu0 0
    %665 = vmatpush1.bf16.msra.mxu0 0
    %666 = vmatprep.subr.bf16.mxu0 0
    %667 = vmatpush1.bf16.msra.mxu0 0
    %668 = vmatprep.subr.bf16.mxu0 0
    %669 = vmatpush1.bf16.msra.mxu0 0
    %670 = vmatprep.subr.bf16.mxu0 0
    %671 = vmatpush1.bf16.msra.mxu0 0
    %672 = vmatprep.subr.bf16.mxu0 0
    %673 = vmatpush1.bf16.msra.mxu0 0
    %674 = vmatprep.subr.bf16.mxu0 0
    %675 = vmatpush1.bf16.msra.mxu0 0
    %676 = vmatprep.subr.bf16.mxu0 0
    %677 = vmatpush1.bf16.msra.mxu0 0
    %678 = vmatprep.subr.bf16.mxu0 0
    %679 = vmatpush1.bf16.msra.mxu0 0
    %680 = vmatprep.subr.bf16.mxu0 0
    %681 = vmatpush1.bf16.msra.mxu0 0
    %682 = vmatprep.subr.bf16.mxu0 0
    %683 = vmatpush1.bf16.msra.mxu0 0
    %684 = vmatprep.subr.bf16.mxu0 0
    %685 = vmatpush1.bf16.msra.mxu0 0
    %686 = vmatprep.subr.bf16.mxu0 0
    %687 = vmatpush1.bf16.msra.mxu0 0
    %688 = vmatprep.subr.bf16.mxu0 0
    %689 = vmatpush1.bf16.msra.mxu0 0
    %690 = vmatprep.mubr.bf16.mxu0 0
    %691 = vmatmul.mubr.bf16.gmra.mrb[0].mxu0 %v217
    %v692 = vpop.f32.mrb[0].mxu0
    %v693 = vadd.f32 %v641, %v692
    %v694 = vpop.f32.mrb[0].mxu0
    %v695 = vpop.f32.mrb[0].mxu0
    %v696 = vadd.f32 %v644, %v695
    %v697 = vpop.f32.mrb[0].mxu0
    %698 = vmatprep.mubr.bf16.mxu0 0
    %699 = vmatmul.mubr.bf16.gmra.mrb[0].mxu0 %v220
    %v700 = vpop.f32.mrb[0].mxu0
    %v701 = vadd.f32 %v649, %v700
    %v702 = vpop.f32.mrb[0].mxu0
    %v703 = vpop.f32.mrb[0].mxu0
    %v704 = vadd.f32 %v652, %v703
    %v705 = vpop.f32.mrb[0].mxu0
    %706 = vdwg.mxu0
    %v707 = vld [vmem:[#allocation5] sm:$0xf]
    %v708 = vld [vmem:[#allocation5 + $0x4] sm:$0xf]
    %v709 = vld [vmem:[#allocation5 + $0x8] sm:$0xf]
    %v710 = vld [vmem:[#allocation5 + $0xc] sm:$0xf]
    %v711 = vpack.c.bf16 %v696, %v693
    %v712 = vpack.c.bf16 %v704, %v701
    %v713 = vld [vmem:[#allocation11] sm:$0x1]
    %v715 = vlaneseq
    %v716 = vshrl.u32 %v715, 7
    %v717 = vsub.s32 0, %v716
    %v718 = vrot.slane %v713, %v717
    %v724 = vunpack.c.l.b16 %v707
    %v725 = vunpack.c.l.b16 %v708
    %v726 = vunpack.c.l.b16 %v709
    %v727 = vunpack.c.l.b16 %v710
    %v728 = vpack.c.b16 %v725, %v724
    %v729 = vpack.c.b16 %v727, %v726
    %v731 = vsel %vm149, %v728, 0
    %v734 = vsel %vm149, %v729, 0
    %736 = vmatprep.subr.bf16.mxu0 0
    %737 = vmatpush1.bf16.msra.mxu0 %v711
    %738 = vmatprep.subr.bf16.mxu0 0
    %739 = vmatpush1.bf16.msra.mxu0 %v712
    %740 = vmatprep.subr.bf16.mxu0 0
    %741 = vmatpush1.bf16.msra.mxu0 0
    %742 = vmatprep.subr.bf16.mxu0 0
    %743 = vmatpush1.bf16.msra.mxu0 0
    %744 = vmatprep.subr.bf16.mxu0 0
    %745 = vmatpush1.bf16.msra.mxu0 0
    %746 = vmatprep.subr.bf16.mxu0 0
    %747 = vmatpush1.bf16.msra.mxu0 0
    %748 = vmatprep.subr.bf16.mxu0 0
    %749 = vmatpush1.bf16.msra.mxu0 0
    %750 = vmatprep.subr.bf16.mxu0 0
    %751 = vmatpush1.bf16.msra.mxu0 0
    %752 = vmatprep.subr.bf16.mxu0 0
    %753 = vmatpush1.bf16.msra.mxu0 0
    %754 = vmatprep.subr.bf16.mxu0 0
    %755 = vmatpush1.bf16.msra.mxu0 0
    %756 = vmatprep.subr.bf16.mxu0 0
    %757 = vmatpush1.bf16.msra.mxu0 0
    %758 = vmatprep.subr.bf16.mxu0 0
    %759 = vmatpush1.bf16.msra.mxu0 0
    %760 = vmatprep.subr.bf16.mxu0 0
    %761 = vmatpush1.bf16.msra.mxu0 0
    %762 = vmatprep.subr.bf16.mxu0 0
    %763 = vmatpush1.bf16.msra.mxu0 0
    %764 = vmatprep.subr.bf16.mxu0 0
    %765 = vmatpush1.bf16.msra.mxu0 0
    %766 = vmatprep.subr.bf16.mxu0 0
    %767 = vmatpush1.bf16.msra.mxu0 0
    %768 = vmatprep.mubr.bf16.mxu0 0
    %769 = vmatmul.mubr.bf16.gmra.mrb[0].mxu0 %v731
    %v770 = vpop.f32.mrb[0].mxu0
    %v771 = vadd.f32 %v718, %v770
    %v772 = vpop.f32.mrb[0].mxu0
    %v773 = vpop.f32.mrb[0].mxu0
    %v774 = vadd.f32 %v718, %v773
    %v775 = vpop.f32.mrb[0].mxu0
    %776 = vmatprep.mubr.bf16.mxu0 0
    %777 = vmatmul.mubr.bf16.gmra.mrb[0].mxu0 %v734
    %v778 = vpop.f32.mrb[0].mxu0
    %v779 = vadd.f32 %v718, %v778
    %v780 = vpop.f32.mrb[0].mxu0
    %v781 = vpop.f32.mrb[0].mxu0
    %v782 = vadd.f32 %v718, %v781
    %v783 = vpop.f32.mrb[0].mxu0
    %784 = vdwg.mxu0
    %v785 = vtanh.pop %v771
    %v786 = vtanh.pop %v774
    %v787 = vtanh.pop %v779
    %v788 = vtanh.pop %v782
    %v789 = vmul.f32 %v492, %v126
    %v790 = vmul.f32 %v494, %v127
    %v791 = vmul.f32 %v574, %v128
    %v792 = vmul.f32 %v576, %v129
    %v793 = vsub.f32 1.0, %v492
    %v794 = vsub.f32 1.0, %v494
    %v795 = vsub.f32 1.0, %v574
    %v796 = vsub.f32 1.0, %v576
    %v797 = vmul.f32 %v793, %v785
    %v798 = vmul.f32 %v794, %v786
    %v799 = vmul.f32 %v795, %v787
    %v800 = vmul.f32 %v796, %v788
    %v801 = vadd.f32 %v789, %v797
    %v802 = vadd.f32 %v790, %v798
    %v803 = vadd.f32 %v791, %v799
    %v804 = vadd.f32 %v792, %v800
    %805 = vst.msk [vmem:[#allocation13] sm:$0xff] %vm149, %v801
    %806 = vst.msk [vmem:[#allocation13 + $0x8] sm:$0xff] %vm149, %v802
    %807 = vst.msk [vmem:[#allocation13 + $0x10] sm:$0xff] %vm149, %v803
    %808 = vst.msk [vmem:[#allocation13 + $0x18] sm:$0xff] %vm149, %v804
    // Predicated region
    $region78: #{tgcn_cell_step.1} parent=1 // pred_check
      _
    $region79: #{tgcn_cell_step.1} parent=1 // pred_check_branch
      %810 = sbr.rel (0) target = $region81
    $region80: #{tgcn_cell_step.1} parent=1 // pred_region
      %s812 = ssub.s32 512, 512
      %813 = vsyncadd [#allocation4], %s812
      %s814 = sshll.u32 [#allocation13], 4
      %s815 = int_to_ptr.vmem [resolvable:$true] %s814
      %820 = dma.vmem_to_hbm [thread:$0]  %s815, 512, %s13, [#allocation4], 128, 128, 8
    $region81: #{tgcn_cell_step.1} parent=1 // pred_fallthru
      _
    // Predicated region
    $region82: #{tgcn_cell_step.1} parent=1 // pred_check
      _
    $region83: #{tgcn_cell_step.1} parent=1 // pred_check_branch
      %822 = sbr.rel (0) target = $region85
    $region84: #{tgcn_cell_step.1} parent=1 // pred_region
      %823 = dma.done [#allocation4], 512
    $region85: #{tgcn_cell_step.1} parent=1 // pred_fallthru
      _
    %824 = vsyncpa [#allocation3], 1
    %825 = vsyncpa [#allocation6], 1
    %826 = vsyncpa [#allocation9], 1
    %827 = vsyncpa [#allocation12], 1
    %828 = vsyncpa [#allocation4], 1

</llo_original>
